<compile_context>
chip_gen: v7x
topology: tpu7x:2x2x1
jax: 0.10.0
libtpu: 0.0.40
codegen_flags: <defaults>
</compile_context>

<pallas_src>
import functools

import numpy as np
import jax
import jax.numpy as jnp
from jax import lax
from jax.experimental import pallas as pl
from jax.experimental.pallas import tpu as pltpu


def _round_up(x, m):
    return ((x + m - 1) // m) * m


# ---------------------------------------------------------------------------
# Kernel 1: one-shot row softmax of the similarity matrix (O(V^2), done once).
# ---------------------------------------------------------------------------
def sim_row_softmax_kernel(sim_ref, out_ref, *, inv_tau):
    sim = sim_ref[...]                                    # (TV, V) f32
    smooth = jnp.exp(sim * inv_tau) if inv_tau is not None else sim
    row_sum = jnp.sum(smooth, axis=-1, keepdims=True)     # (TV, 1)
    out_ref[...] = smooth / row_sum                       # each row sums to 1


def _sim_row_softmax(sim_matrix, tau_word):
    v = sim_matrix.shape[0]
    inv_tau = (1.0 / tau_word) if tau_word else None
    tv = v                                   # full rows if nothing divides
    for cand in (512, 256, 128, 64, 32, 16, 8):
        if v % cand == 0:
            tv = cand
            break
    kernel = functools.partial(sim_row_softmax_kernel, inv_tau=inv_tau)
    return pl.pallas_call(
        kernel,
        grid=(v // tv,),
        in_specs=[pl.BlockSpec((tv, v), lambda i: (i, 0))],
        out_specs=pl.BlockSpec((tv, v), lambda i: (i, 0)),
        out_shape=jax.ShapeDtypeStruct((v, v), jnp.float32),
        compiler_params=pltpu.CompilerParams(dimension_semantics=("parallel",)),
    )(sim_matrix.astype(jnp.float32))


# ---------------------------------------------------------------------------
# Kernel 2: tiled loss reduction over the NT token axis.
#   Lane layout of the (8,128) accumulator/output block (per core):
#     lane 0: -sum(logp[gold] * mask)          (ML numerator)
#     lane 1: -sum(logp * mask * Snorm[tgt])   (smoothed numerator)
#     lane 2:  sum(mask)
#     lane 3:  sum(valid * Snorm[tgt]^2)       (for word_std)
# ---------------------------------------------------------------------------
def word_smooth_kernel(tgt_ref, mask_ref, valid_ref, logp_ref, snorm_ref, out_ref):
    @pl.when(pl.program_id(1) == 0)
    def _init():
        out_ref[...] = jnp.zeros_like(out_ref)

    logp = logp_ref[...]                                   # (TM, V) f32
    tgt = tgt_ref[...]                                     # (TM, 1) i32
    mask = mask_ref[...]                                   # (TM, 1) f32
    valid = valid_ref[...]                                 # (TM, 1) f32 (0 on pad rows)

    tm, v = logp.shape
    lane_v = lax.broadcasted_iota(jnp.int32, (tm, v), 1)
    one_hot = (lane_v == tgt).astype(jnp.float32)          # (TM, V)

    # Gather the pre-normalized similarity rows via the MXU (fine for small V).
    # TODO(synk): for large V switch to a scalar-prefetch / DMA row gather.
    smooth = jnp.dot(one_hot, snorm_ref[...],
                     preferred_element_type=jnp.float32)   # (TM, V), rows sum to 1

    logp_m = logp * mask                                   # reused by both losses
    gold = jnp.sum(logp_m * one_hot, axis=-1, keepdims=True)    # (TM, 1)
    sm_dot = jnp.sum(logp_m * smooth, axis=-1, keepdims=True)   # (TM, 1)
    sq = jnp.sum(smooth * smooth, axis=-1, keepdims=True) * valid

    ml_p = -jnp.sum(gold, keepdims=True)                   # (1, 1)
    sm_p = -jnp.sum(sm_dot, keepdims=True)                 # (1, 1)
    msum_p = jnp.sum(mask, keepdims=True)                  # (1, 1)
    wsq_p = jnp.sum(sq, keepdims=True)                     # (1, 1)

    lane = lax.broadcasted_iota(jnp.int32, out_ref.shape, 1)    # (8, 128)
    vec = (jnp.where(lane == 0, ml_p, 0.0)
           + jnp.where(lane == 1, sm_p, 0.0)
           + jnp.where(lane == 2, msum_p, 0.0)
           + jnp.where(lane == 3, wsq_p, 0.0))
    out_ref[...] += vec


def _block_vmem_bytes(tm, v):
    # double-buffered (TM,V) logp tile + resident (V,V) Snorm (count 2x)
    # + 3 double-buffered (TM,1) side inputs (lane-padded to 128) + out block.
    return 4 * (2 * tm * v + 2 * v * v + 3 * 2 * tm * 128 + 2 * 8 * 128)


def _choose_row_tile(nt, v, budget_bytes=24 * 1024 * 1024):
    cap = max(8, _round_up(nt, 8))
    tm = 8
    for cand in (8, 16, 32, 64, 128, 256, 512, 1024):
        if cand <= cap and _block_vmem_bytes(cand, v) <= budget_bytes:
            tm = cand
    return tm


def word_smooth_forward(logp, target, mask, sim_matrix, *,
                        tau_word, alpha, normalize_batch=True, num_cores=2):
    """Returns ({'final', 'ml'}, {'word_mean', 'word_std'}) like forward_dense."""
    n, t, v = logp.shape
    nt = n * t

    # One-shot: Snorm = normalize_reward(exp(Sim / tau)) — rows sum to 1.
    snorm = _sim_row_softmax(sim_matrix, tau_word)

    tm = _choose_row_tile(nt, v)
    nt_pad = _round_up(nt, num_cores * tm)
    pad = nt_pad - nt

    logp_flat = logp.reshape(nt, v).astype(jnp.float32)
    tgt_flat = target.reshape(nt, 1).astype(jnp.int32)
    mask_flat = mask.reshape(nt, 1).astype(jnp.float32)
    valid = jnp.ones((nt, 1), jnp.float32)
    if pad:
        logp_flat = jnp.pad(logp_flat, ((0, pad), (0, 0)))
        tgt_flat = jnp.pad(tgt_flat, ((0, pad), (0, 0)))
        mask_flat = jnp.pad(mask_flat, ((0, pad), (0, 0)))
        valid = jnp.pad(valid, ((0, pad), (0, 0)))

    inner = nt_pad // (num_cores * tm)
    row_idx = lambda c, i: (c * inner + i, 0)

    vmem_limit = int(min(48 * 1024 * 1024,
                         max(16 * 1024 * 1024, 2 * _block_vmem_bytes(tm, v))))

    out = pl.pallas_call(
        word_smooth_kernel,
        grid=(num_cores, inner),
        in_specs=[
            pl.BlockSpec((tm, 1), row_idx),            # targets
            pl.BlockSpec((tm, 1), row_idx),            # mask
            pl.BlockSpec((tm, 1), row_idx),            # valid (anti-padding)
            pl.BlockSpec((tm, v), row_idx),            # logp (streamed)
            pl.BlockSpec((v, v), lambda c, i: (0, 0)),  # Snorm (resident)
        ],
        out_specs=pl.BlockSpec((None, 8, 128), lambda c, i: (c, 0, 0)),
        out_shape=jax.ShapeDtypeStruct((num_cores, 8, 128), jnp.float32),
        compiler_params=pltpu.CompilerParams(
            dimension_semantics=("parallel", "arbitrary"),
            vmem_limit_bytes=vmem_limit),
    )(tgt_flat, mask_flat, valid, logp_flat, snorm)

    partials = jnp.sum(out[:, 0, :], axis=0)       # (128,) — combine cores
    ml_num, sm_num, mask_sum, w_sq = (partials[0], partials[1],
                                      partials[2], partials[3])

    if normalize_batch:
        denom = jnp.where(mask_sum > 0, mask_sum, 1.0)
        ml_output = ml_num / denom
        output = sm_num / denom
    else:
        ml_output = ml_num
        output = sm_num

    final = alpha * output + (1.0 - alpha) * ml_output

    # Each normalized Snorm row sums to 1 -> mean over the NT x V smooth matrix
    # is 1/V analytically; only E[x^2] needs the kernel accumulator.
    n_elems = float(nt * v)
    word_mean = jnp.float32(1.0 / v)
    word_std = jnp.sqrt(jnp.maximum(w_sq / n_elems - word_mean * word_mean, 0.0))

    return ({'final': final, 'ml': ml_output},
            {'word_mean': word_mean, 'word_std': word_std})


def reference(logp, target, mask, sim, tau, alpha):
    """Pure-JAX replica of forward_dense for verification."""
    n, t, v = logp.shape
    logp_f = logp.reshape(-1, v)
    tgt = target.reshape(-1)
    m = mask.reshape(-1, 1)
    sim_rows = sim[tgt]
    smooth = jnp.exp(sim_rows / tau)
    smooth = smooth / smooth.sum(-1, keepdims=True)
    gold = jnp.take_along_axis(logp_f, tgt[:, None], axis=1)
    msum = m.sum()
    ml = -(gold * m).sum() / msum
    out = -(logp_f * m * smooth).sum() / msum
    final = alpha * out + (1.0 - alpha) * ml
    return final, ml, smooth.mean(), smooth.std()


if __name__ == "__main__":
    # Small shapes: batch=2, seq=8, vocab=128 (lane-friendly)
    N, T, V = 2, 8, 128
    tau_word, alpha = 0.3, 0.7

    key = jax.random.PRNGKey(0)
    k1, k2, k3, k4 = jax.random.split(key, 4)

    logits = jax.random.normal(k1, (N, T, V), jnp.float32)
    logp = jax.nn.log_softmax(logits, axis=-1)
    target = jax.random.randint(k2, (N, T), 0, V)
    mask = (jax.random.uniform(k3, (N, T)) > 0.2).astype(jnp.float32)

    # Deterministic synthetic similarity matrix; module does M = M - 1 at init
    # (promote_rarity = 0, so no IDF subtraction).
    sim_raw = jax.random.uniform(k4, (V, V), jnp.float32)
    sim_raw = 0.5 * (sim_raw + sim_raw.T)
    sim_raw = sim_raw.at[jnp.arange(V), jnp.arange(V)].set(1.0)
    sim_matrix = sim_raw - 1.0

    out, stats = word_smooth_forward(logp, target, mask, sim_matrix,
                                     tau_word=tau_word, alpha=alpha,
                                     normalize_batch=True)
    jax.block_until_ready(out['final'])

    ref_final, ref_ml, ref_mean, ref_std = reference(
        logp, target, mask, sim_matrix, tau_word, alpha)

    np.testing.assert_allclose(float(out['final']), float(ref_final), rtol=1e-4, atol=1e-5)
    np.testing.assert_allclose(float(out['ml']), float(ref_ml), rtol=1e-4, atol=1e-5)
    np.testing.assert_allclose(float(stats['word_mean']), float(ref_mean), rtol=1e-4, atol=1e-6)
    np.testing.assert_allclose(float(stats['word_std']), float(ref_std), rtol=1e-4, atol=1e-6)

    print("KERNEL_OK")
</pallas_src>

<mosaic_0001>
module attributes {stable_mosaic.version = 11 : i64} {
  func.func @sim_row_softmax_kernel(%arg0: i32, %arg1: memref<128x128xf32, #tpu.memory_space<vmem>>, %arg2: memref<128x128xf32, #tpu.memory_space<vmem>>) attributes {dimension_semantics = [#tpu.dimension_semantics<parallel>], iteration_bounds = array<i64: 1>, scalar_prefetch = 0 : i64, scratch_operands = 0 : i64, tpu.core_type = #tpu.core_type<tc>, window_params = [{transform_indices = @transform_0, window_bounds = array<i64: 128, 128>}, {transform_indices = @transform_1, window_bounds = array<i64: 128, 128>}]} {
    %c0 = arith.constant 0 : index
    %c0_0 = arith.constant 0 : index
    %0 = vector.load %arg1[%c0, %c0_0] : memref<128x128xf32, #tpu.memory_space<vmem>>, vector<128x128xf32>
    %cst = arith.constant 3.33333325 : f32
    %1 = vector.broadcast %cst : f32 to vector<128x128xf32>
    %2 = arith.mulf %0, %1 : vector<128x128xf32>
    %3 = math.exp %2 : vector<128x128xf32>
    %cst_1 = arith.constant dense<0.000000e+00> : vector<128xf32>
    %4 = vector.multi_reduction <add>, %3, %cst_1 [1] : vector<128x128xf32> to vector<128xf32>
    %5 = vector.shape_cast %4 : vector<128xf32> to vector<128x1xf32>
    %6 = vector.broadcast %5 : vector<128x1xf32> to vector<128x128xf32>
    %7 = arith.divf %3, %6 : vector<128x128xf32>
    %c0_2 = arith.constant 0 : index
    %c0_3 = arith.constant 0 : index
    %8 = vector.load %arg2[%c0_2, %c0_3] : memref<128x128xf32, #tpu.memory_space<vmem>>, vector<128x128xf32>
    tpu.vector_store %arg2[%c0_2, %c0_3], %7 {strides = array<i32>} : memref<128x128xf32, #tpu.memory_space<vmem>>, vector<128x128xf32>,
    return
  }
  func.func @transform_0(%arg0: i32) -> (i32, i32) {
    %c0_i32 = arith.constant 0 : i32
    %c0_i32_0 = arith.constant 0 : i32
    return %arg0, %c0_i32 : i32, i32
  }
  func.func @transform_1(%arg0: i32) -> (i32, i32) {
    %c0_i32 = arith.constant 0 : i32
    %c0_i32_0 = arith.constant 0 : i32
    return %arg0, %c0_i32 : i32, i32
  }
}

</mosaic_0001>

<llo_original>
// kernel: tpu_custom_call.1
$region0: #{tpu_custom_call.1}
  #allocation0 [shape = 'u32[]', space=smem, size = 0x4, offset = 0x4, fixed_abs, tag = 'smem constant byte address 0x4 - core index']
  #allocation1 [shape = 'u32[144,128]{1,0:T(1,128)}', space=vmem, size = 0x12000, scoped, tag = 'internal scratch']
  %s0 = inlined_call_operand.hbm [shape: f32[128,128], index: 0, kind: input, shape index: {}]
  %s1 = inlined_call_operand.hbm [shape: f32[128,128], index: 1, kind: output, shape index: {}]
  %s2 = sld [smem:[#allocation0]]
  $region18: #{tpu_custom_call.1} parent=0
    _
  %s4 = ssub.s32 1, %s2
  %s5 = scalar_select 0, %s4, %s2
  $region1: #{tpu_custom_call.1} parent=0
    #allocation2 [shape = 'u8[65536]{0}', space=vmem, size = 0x10000, scoped, tag = 'input window, operand 0, single buffered']
    #allocation3 [shape = 's32[1]{0}', space=sflag, size = 0x4, scoped, tag = 'scoped memory for tpu_custom_call.1']
    #allocation4 [shape = 's32[1]{0}', space=sflag, size = 0x4, scoped, tag = 'scoped memory for tpu_custom_call.1']
    #allocation5 [shape = 'u8[65536]{0}', space=vmem, size = 0x10000, scoped, tag = 'output window, operand 0, single buffered']
    %6 = vsyncpa [#allocation3], 0
    %7 = vsyncpa [#allocation4], 0
    // Predicated region
    $region2: #{tpu_custom_call.1} parent=1 // pred_check
      _
    $region3: #{tpu_custom_call.1} parent=1 // pred_check_branch
      %9 = sbr.rel (0) target = $region5
    $region4: #{tpu_custom_call.1} parent=1 // pred_region
      %s11 = ssub.s32 2048, 2048
      %12 = vsyncadd [#allocation3], %s11
      %s13 = sshll.u32 [#allocation2], 4
      %s14 = int_to_ptr.vmem [resolvable:$true] %s13
      %19 = dma.hbm_to_vmem [thread:$0]  %s0, 2048, %s14, [#allocation3], 128, 128, 8
    $region5: #{tpu_custom_call.1} parent=1 // pred_fallthru
      _
    // Predicated region
    $region6: #{tpu_custom_call.1} parent=1 // pred_check
      _
    $region7: #{tpu_custom_call.1} parent=1 // pred_check_branch
      %21 = sbr.rel (0) target = $region9
    $region8: #{tpu_custom_call.1} parent=1 // pred_region
      %22 = dma.done [#allocation3], 2048
    $region9: #{tpu_custom_call.1} parent=1 // pred_fallthru
      _
    %v23 = vld [vmem:[#allocation2] sm:$0xff]
    %v24 = vld [vmem:[#allocation2 + $0x8] sm:$0xff]
    %v25 = vld [vmem:[#allocation2 + $0x10] sm:$0xff]
    %v26 = vld [vmem:[#allocation2 + $0x18] sm:$0xff]
    %v27 = vld [vmem:[#allocation2 + $0x20] sm:$0xff]
    %v28 = vld [vmem:[#allocation2 + $0x28] sm:$0xff]
    %v29 = vld [vmem:[#allocation2 + $0x30] sm:$0xff]
    %v30 = vld [vmem:[#allocation2 + $0x38] sm:$0xff]
    %v31 = vld [vmem:[#allocation2 + $0x40] sm:$0xff]
    %v32 = vld [vmem:[#allocation2 + $0x48] sm:$0xff]
    %v33 = vld [vmem:[#allocation2 + $0x50] sm:$0xff]
    %v34 = vld [vmem:[#allocation2 + $0x58] sm:$0xff]
    %v35 = vld [vmem:[#allocation2 + $0x60] sm:$0xff]
    %v36 = vld [vmem:[#allocation2 + $0x68] sm:$0xff]
    %v37 = vld [vmem:[#allocation2 + $0x70] sm:$0xff]
    %v38 = vld [vmem:[#allocation2 + $0x78] sm:$0xff]
    %v39 = vmul.f32 %v23, 3.3333333
    %v40 = vmul.f32 %v24, 3.3333333
    %v41 = vmul.f32 %v25, 3.3333333
    %v42 = vmul.f32 %v26, 3.3333333
    %v43 = vmul.f32 %v27, 3.3333333
    %v44 = vmul.f32 %v28, 3.3333333
    %v45 = vmul.f32 %v29, 3.3333333
    %v46 = vmul.f32 %v30, 3.3333333
    %v47 = vmul.f32 %v31, 3.3333333
    %v48 = vmul.f32 %v32, 3.3333333
    %v49 = vmul.f32 %v33, 3.3333333
    %v50 = vmul.f32 %v34, 3.3333333
    %v51 = vmul.f32 %v35, 3.3333333
    %v52 = vmul.f32 %v36, 3.3333333
    %v53 = vmul.f32 %v37, 3.3333333
    %v54 = vmul.f32 %v38, 3.3333333
    %v55 = vmul.f32 %v39, 1.442695
    %v56 = vpow.pop %v55
    %v57 = vmul.f32 %v40, 1.442695
    %v58 = vpow.pop %v57
    %v59 = vmul.f32 %v41, 1.442695
    %v60 = vpow.pop %v59
    %v61 = vmul.f32 %v42, 1.442695
    %v62 = vpow.pop %v61
    %v63 = vmul.f32 %v43, 1.442695
    %v64 = vpow.pop %v63
    %v65 = vmul.f32 %v44, 1.442695
    %v66 = vpow.pop %v65
    %v67 = vmul.f32 %v45, 1.442695
    %v68 = vpow.pop %v67
    %v69 = vmul.f32 %v46, 1.442695
    %v70 = vpow.pop %v69
    %v71 = vmul.f32 %v47, 1.442695
    %v72 = vpow.pop %v71
    %v73 = vmul.f32 %v48, 1.442695
    %v74 = vpow.pop %v73
    %v75 = vmul.f32 %v49, 1.442695
    %v76 = vpow.pop %v75
    %v77 = vmul.f32 %v50, 1.442695
    %v78 = vpow.pop %v77
    %v79 = vmul.f32 %v51, 1.442695
    %v80 = vpow.pop %v79
    %v81 = vmul.f32 %v52, 1.442695
    %v82 = vpow.pop %v81
    %v83 = vmul.f32 %v53, 1.442695
    %v84 = vpow.pop %v83
    %v85 = vmul.f32 %v54, 1.442695
    %v86 = vpow.pop %v85
    %87 = vadd.xlane.f32.xlu0 %v56
    %v88 = vpop.xlane.xlu0 %87
    %89 = vadd.xlane.f32.xlu0 %v58
    %v90 = vpop.xlane.xlu0 %89
    %91 = vadd.xlane.f32.xlu0 %v60
    %v92 = vpop.xlane.xlu0 %91
    %93 = vadd.xlane.f32.xlu0 %v62
    %v94 = vpop.xlane.xlu0 %93
    %95 = vadd.xlane.f32.xlu0 %v64
    %v96 = vpop.xlane.xlu0 %95
    %97 = vadd.xlane.f32.xlu0 %v66
    %v98 = vpop.xlane.xlu0 %97
    %99 = vadd.xlane.f32.xlu0 %v68
    %v100 = vpop.xlane.xlu0 %99
    %101 = vadd.xlane.f32.xlu0 %v70
    %v102 = vpop.xlane.xlu0 %101
    %103 = vadd.xlane.f32.xlu0 %v72
    %v104 = vpop.xlane.xlu0 %103
    %105 = vadd.xlane.f32.xlu0 %v74
    %v106 = vpop.xlane.xlu0 %105
    %107 = vadd.xlane.f32.xlu0 %v76
    %v108 = vpop.xlane.xlu0 %107
    %109 = vadd.xlane.f32.xlu0 %v78
    %v110 = vpop.xlane.xlu0 %109
    %111 = vadd.xlane.f32.xlu0 %v80
    %v112 = vpop.xlane.xlu0 %111
    %113 = vadd.xlane.f32.xlu0 %v82
    %v114 = vpop.xlane.xlu0 %113
    %115 = vadd.xlane.f32.xlu0 %v84
    %v116 = vpop.xlane.xlu0 %115
    %117 = vadd.xlane.f32.xlu0 %v86
    %v118 = vpop.xlane.xlu0 %117
    %v119 = vrcp.pop %v88
    %v120 = vmul.f32 %v56, %v119
    %v121 = vrcp.pop %v90
    %v122 = vmul.f32 %v58, %v121
    %v123 = vrcp.pop %v92
    %v124 = vmul.f32 %v60, %v123
    %v125 = vrcp.pop %v94
    %v126 = vmul.f32 %v62, %v125
    %v127 = vrcp.pop %v96
    %v128 = vmul.f32 %v64, %v127
    %v129 = vrcp.pop %v98
    %v130 = vmul.f32 %v66, %v129
    %v131 = vrcp.pop %v100
    %v132 = vmul.f32 %v68, %v131
    %v133 = vrcp.pop %v102
    %v134 = vmul.f32 %v70, %v133
    %v135 = vrcp.pop %v104
    %v136 = vmul.f32 %v72, %v135
    %v137 = vrcp.pop %v106
    %v138 = vmul.f32 %v74, %v137
    %v139 = vrcp.pop %v108
    %v140 = vmul.f32 %v76, %v139
    %v141 = vrcp.pop %v110
    %v142 = vmul.f32 %v78, %v141
    %v143 = vrcp.pop %v112
    %v144 = vmul.f32 %v80, %v143
    %v145 = vrcp.pop %v114
    %v146 = vmul.f32 %v82, %v145
    %v147 = vrcp.pop %v116
    %v148 = vmul.f32 %v84, %v147
    %v149 = vrcp.pop %v118
    %v150 = vmul.f32 %v86, %v149
    %151 = vst [vmem:[#allocation5] sm:$0xff] %v120
    %152 = vst [vmem:[#allocation5 + $0x8] sm:$0xff] %v122
    %153 = vst [vmem:[#allocation5 + $0x10] sm:$0xff] %v124
    %154 = vst [vmem:[#allocation5 + $0x18] sm:$0xff] %v126
    %155 = vst [vmem:[#allocation5 + $0x20] sm:$0xff] %v128
    %156 = vst [vmem:[#allocation5 + $0x28] sm:$0xff] %v130
    %157 = vst [vmem:[#allocation5 + $0x30] sm:$0xff] %v132
    %158 = vst [vmem:[#allocation5 + $0x38] sm:$0xff] %v134
    %159 = vst [vmem:[#allocation5 + $0x40] sm:$0xff] %v136
    %160 = vst [vmem:[#allocation5 + $0x48] sm:$0xff] %v138
    %161 = vst [vmem:[#allocation5 + $0x50] sm:$0xff] %v140
    %162 = vst [vmem:[#allocation5 + $0x58] sm:$0xff] %v142
    %163 = vst [vmem:[#allocation5 + $0x60] sm:$0xff] %v144
    %164 = vst [vmem:[#allocation5 + $0x68] sm:$0xff] %v146
    %165 = vst [vmem:[#allocation5 + $0x70] sm:$0xff] %v148
    %166 = vst [vmem:[#allocation5 + $0x78] sm:$0xff] %v150
    // Predicated region
    $region10: #{tpu_custom_call.1} parent=1 // pred_check
      _
    $region11: #{tpu_custom_call.1} parent=1 // pred_check_branch
      %168 = sbr.rel (0) target = $region13
    $region12: #{tpu_custom_call.1} parent=1 // pred_region
      %s170 = ssub.s32 2048, 2048
      %171 = vsyncadd [#allocation4], %s170
      %s172 = sshll.u32 [#allocation5], 4
      %s173 = int_to_ptr.vmem [resolvable:$true] %s172
      %178 = dma.vmem_to_hbm [thread:$0]  %s173, 2048, %s1, [#allocation4], 128, 128, 8
    $region13: #{tpu_custom_call.1} parent=1 // pred_fallthru
      _
    // Predicated region
    $region14: #{tpu_custom_call.1} parent=1 // pred_check
      _
    $region15: #{tpu_custom_call.1} parent=1 // pred_check_branch
      %180 = sbr.rel (0) target = $region17
    $region16: #{tpu_custom_call.1} parent=1 // pred_region
      %181 = dma.done [#allocation4], 2048
    $region17: #{tpu_custom_call.1} parent=1 // pred_fallthru
      _
    %182 = vsyncpa [#allocation3], 1
    %183 = vsyncpa [#allocation4], 1

</llo_original>
